<compile_context>
chip_gen: v7x
topology: tpu7x:2x2x1
jax: 0.10.0
libtpu: 0.0.40
codegen_flags: <defaults>
</compile_context>

<pallas_src>
import functools

import jax
import jax.numpy as jnp
import numpy as np
from jax.experimental import pallas as pl
from jax.experimental.pallas import tpu as pltpu


_NEG_INF = -1e30  # big-but-finite mask value (avoids inf/NaN risk on the VPU)


def _round_up(x, m):
    return (x + m - 1) // m * m


@functools.lru_cache(maxsize=None)
def _roll_mode():
    """Detect pltpu.roll's shift convention with a one-off probe kernel.

    Returns "np"     if pltpu.roll matches np.roll      -> use shift = N - k
            "alt"    if it rotates the opposite way     -> use shift = k
            "concat" if roll is unusable                -> slice-based shift
    The conv-tap accumulation needs y[r] = x[r + k]; probing keeps that shift
    correct regardless of the underlying rotate direction.
    """
    try:
        x = jnp.arange(8 * 128, dtype=jnp.float32).reshape(8, 128)

        def probe(x_ref, o_ref):
            o_ref[...] = pltpu.roll(x_ref[...], 1, axis=0)

        y = pl.pallas_call(
            probe, out_shape=jax.ShapeDtypeStruct((8, 128), jnp.float32))(x)
        y = np.asarray(jax.block_until_ready(y))
        xn = np.asarray(x)
        if np.array_equal(y, np.roll(xn, 1, axis=0)):
            return "np"
        if np.array_equal(y, np.roll(xn, -1, axis=0)):
            return "alt"
    except Exception:
        pass
    return "concat"


def _shift_up(x, k, mode):
    """y[r, :] = x[(r + k) % N, :] along the sublane axis (XLU roll)."""
    if k == 0:
        return x
    n = x.shape[0]
    if mode == "np":
        return pltpu.roll(x, n - k, axis=0)
    if mode == "alt":
        return pltpu.roll(x, k, axis=0)
    return jnp.concatenate([x[k:], x[:k]], axis=0)


def _pick_batch_tile(B, per_row_bytes, weight_bytes, budget_bytes=20 << 20):
    """Largest batch tile whose double-buffered blocks fit the VMEM budget.

    Budget is chosen to be safe on v7x (64 MiB physical, 32 MiB scoped); on
    v5e/v6e it simply leaves headroom.  When possible, prefer >= 2 grid steps
    on the "parallel" batch axis so both v7x TensorCores get work.
    """
    avail = max(budget_bytes - 2 * weight_bytes, budget_bytes // 4)
    cap = max(8, min(1024, (avail // max(per_row_bytes, 1)) // 8 * 8))
    if B <= 8:
        return B
    divs = [d for d in range(8, min(B, cap) + 1, 8) if B % d == 0]
    if not divs:
        # TODO(synk): batches with no multiple-of-8 divisor fall back to one
        # whole-batch block (fine for toy shapes, revisit for odd prod sizes).
        return B
    tb = max(divs)
    if tb == B and len(divs) > 1:
        tb = max(d for d in divs if d < B)   # force >= 2 parallel grid steps
    return tb


def _make_kernel(TB, S, Gpad, KW, roll_mode):
    def kernel(id_ref, cat_ref, title_ref,
               wid_ref, bid_ref, wcat_ref, bcat_ref,
               convw_ref, mask_ref,
               wcid_ref, wccat_ref, wcpool_ref, bc_ref,
               out_ref):
        relu = lambda x: jnp.maximum(x, 0.0)
        bf16 = jnp.bfloat16

        # ---- id / categories branches (bf16 MXU, f32 accumulate + epilogue) ----
        id_fc = relu(jnp.dot(id_ref[...], wid_ref[...],
                             preferred_element_type=jnp.float32) + bid_ref[...])
        cat_fc = relu(jnp.dot(cat_ref[...], wcat_ref[...],
                              preferred_element_type=jnp.float32) + bcat_ref[...])

        # ---- text conv: one fused projection, tap-major 128-lane groups ----
        # convw column k*Gpad + i*F + f holds conv_w[i][f, 0, k, :].
        proj = jnp.dot(title_ref[...], convw_ref[...],
                       preferred_element_type=jnp.float32)     # (TB*S, KW*Gpad)

        # acc[r, i*F+f] = sum_k proj[r+k, group k]: lane-aligned slice + roll.
        acc = proj[:, 0:Gpad]
        for k in range(1, KW):
            acc = acc + _shift_up(proj[:, k * Gpad:(k + 1) * Gpad], k, roll_mode)

        # mask_ref folds the conv bias (valid rows) and -1e30 (wrapped rows);
        # max_p relu(acc + b) == relu(max_p (acc + b)) since relu is monotone.
        acc3 = acc.reshape(TB, S, Gpad)
        pooled = relu(jnp.max(acc3 + mask_ref[...], axis=1))   # (TB, Gpad)

        # ---- combine FC as K-split partials (no cross-lane feature concat) ----
        combine = (
            jnp.dot(id_fc.astype(bf16), wcid_ref[...],
                    preferred_element_type=jnp.float32)
            + jnp.dot(cat_fc.astype(bf16), wccat_ref[...],
                      preferred_element_type=jnp.float32)
            + jnp.dot(pooled.astype(bf16), wcpool_ref[...],
                      preferred_element_type=jnp.float32)
            + bc_ref[...])                                     # (TB, OUT_PAD)

        # ---- tanh + L2 normalize; padded output lanes are exactly zero ----
        out = jnp.tanh(combine)
        sq = jnp.sum(out * out, axis=1, keepdims=True)
        # rsqrt(max(sq, 1e-24)) == 1 / max(sqrt(sq), 1e-12)  (EUP, no divide)
        out_ref[...] = out * jax.lax.rsqrt(jnp.maximum(sq, 1e-24))

    return kernel


def movie_tower_pallas(params, movie_id, movie_categories, movie_titles,
                       window_sizes):
    f32, bf16 = jnp.float32, jnp.bfloat16

    # ---- glue: embedding gathers + category sum (XLA), bf16 MXU operands ----
    id_emb = params["id_table"][movie_id].astype(bf16)                # (B, E)
    cat_sum = jnp.sum(params["cat_table"][movie_categories],
                      axis=1).astype(bf16)                            # (B, E)
    title_emb = params["title_table"][movie_titles]                   # (B, S, E)

    B, S, E = title_emb.shape
    F = params["conv_w"][0].shape[0]
    n_w = len(window_sizes)
    KW = max(window_sizes)
    OUT = params["comb_w"].shape[0]                                   # 200
    Gpad = _round_up(n_w * F, 128)
    OUT_PAD = _round_up(OUT, 128)

    title2d = title_emb.reshape(B * S, E).astype(bf16)

    # ---- weight re-layout (bf16 matmul weights, f32 biases / mask) ----
    w_id_t = params["id_fc_w"].T.astype(bf16)                         # (E, E)
    b_id = params["id_fc_b"].reshape(1, E).astype(f32)
    w_cat_t = params["cat_fc_w"].T.astype(bf16)
    b_cat = params["cat_fc_b"].reshape(1, E).astype(f32)

    # Fused conv weight: one 128-lane-aligned group per tap index k.
    groups = []
    for k in range(KW):
        cols = []
        for i, wsz in enumerate(window_sizes):
            if k < wsz:
                cols.append(params["conv_w"][i][:, 0, k, :].T)        # (E, F)
            else:
                cols.append(jnp.zeros((E, F), f32))
        g = jnp.concatenate(cols, axis=1)                             # (E, n_w*F)
        groups.append(jnp.pad(g, ((0, 0), (0, Gpad - n_w * F))))
    conv_w_all = jnp.concatenate(groups, axis=1).astype(bf16)         # (E, KW*Gpad)

    # Pool mask: conv bias on valid positions, -1e30 on wrapped/invalid rows.
    neg = np.zeros((S, Gpad), np.float32)
    for i, wsz in enumerate(window_sizes):
        neg[S - wsz + 1:, i * F:(i + 1) * F] = _NEG_INF
    bias_pad = jnp.zeros((Gpad,), f32).at[:n_w * F].set(
        jnp.concatenate([params["conv_b"][i] for i in range(n_w)]))
    pool_mask = jnp.asarray(neg) + bias_pad[None, :]                  # (S, Gpad)

    # Combine FC split into K-partials; output lanes padded to 256.
    wc_t = params["comb_w"].T                                         # (2E+n_w*F, OUT)
    pad_out = ((0, 0), (0, OUT_PAD - OUT))
    wc_id = jnp.pad(wc_t[0:E], pad_out).astype(bf16)                  # (E, OUT_PAD)
    wc_cat = jnp.pad(wc_t[E:2 * E], pad_out).astype(bf16)             # (E, OUT_PAD)
    wc_pool = jnp.pad(wc_t[2 * E:2 * E + n_w * F],
                      ((0, Gpad - n_w * F), (0, OUT_PAD - OUT))).astype(bf16)
    bc = jnp.pad(params["comb_b"], (0, OUT_PAD - OUT)).reshape(1, OUT_PAD).astype(f32)

    weights = [w_id_t, b_id, w_cat_t, b_cat, conv_w_all, pool_mask,
               wc_id, wc_cat, wc_pool, bc]

    # ---- batch tiling from a VMEM byte budget ----
    per_row = 2 * (S * E * 2 + 2 * E * 2 + OUT_PAD * 4)   # bf16 in, f32 out, x2 buf
    w_bytes = sum(int(np.prod(w.shape)) * w.dtype.itemsize for w in weights)
    TB = _pick_batch_tile(B, per_row, w_bytes)
    nb = B // TB

    kernel = _make_kernel(TB, S, Gpad, KW, _roll_mode())

    act_specs = [
        pl.BlockSpec((TB, E), lambda i: (i, 0)),
        pl.BlockSpec((TB, E), lambda i: (i, 0)),
        pl.BlockSpec((TB * S, E), lambda i: (i, 0)),
    ]
    w_specs = [pl.BlockSpec(w.shape, lambda i, nd=w.ndim: (0,) * nd)
               for w in weights]

    out = pl.pallas_call(
        kernel,
        out_shape=jax.ShapeDtypeStruct((B, OUT_PAD), jnp.float32),
        grid=(nb,),
        in_specs=act_specs + w_specs,
        out_specs=pl.BlockSpec((TB, OUT_PAD), lambda i: (i, 0)),
        compiler_params=pltpu.CompilerParams(
            dimension_semantics=("parallel",),
            vmem_limit_bytes=32 * 1024 * 1024),
    )(id_emb, cat_sum, title2d, *weights)
    return out[:, :OUT]


def movie_tower_reference(params, movie_id, movie_categories, movie_titles,
                          window_sizes):
    """Pure-JAX f32 reference mirroring the PyTorch forward (eval mode)."""
    relu = lambda x: jnp.maximum(x, 0.0)
    id_emb = params["id_table"][movie_id]
    cat_emb = jnp.sum(params["cat_table"][movie_categories], axis=1)
    title_emb = params["title_table"][movie_titles]          # (B, S, E)
    B, S, E = title_emb.shape

    id_fc = relu(id_emb @ params["id_fc_w"].T + params["id_fc_b"])
    cat_fc = relu(cat_emb @ params["cat_fc_w"].T + params["cat_fc_b"])

    pools = []
    for i, wsz in enumerate(window_sizes):
        cw = params["conv_w"][i]                              # (F, 1, wsz, E)
        cb = params["conv_b"][i]
        L = S - wsz + 1
        windows = jnp.stack([title_emb[:, p:p + wsz, :] for p in range(L)],
                            axis=1)                           # (B, L, wsz, E)
        conv_out = jnp.einsum("blke,fke->blf", windows, cw[:, 0]) + cb
        pools.append(jnp.max(relu(conv_out), axis=1))         # (B, F)
    pool_flat = jnp.concatenate(pools, axis=-1)

    combine = jnp.concatenate([id_fc, cat_fc, pool_flat], axis=-1)
    out = jnp.tanh(combine @ params["comb_w"].T + params["comb_b"])
    norm = jnp.sqrt(jnp.sum(out * out, axis=1, keepdims=True))
    return out / jnp.maximum(norm, 1e-12)


def init_params(key, mid_num, movie_category_num, movie_title_num,
                embed_dim, window_sizes, filter_num):
    ks = jax.random.split(key, 16)
    E, F = embed_dim, filter_num
    comb_in = 2 * E + len(window_sizes) * F
    params = {
        "id_table": jax.random.normal(ks[0], (mid_num, E), jnp.float32) * 0.1,
        "cat_table": jax.random.normal(ks[1], (movie_category_num, E), jnp.float32) * 0.1,
        "title_table": jax.random.normal(ks[2], (movie_title_num, E), jnp.float32) * 0.1,
        "id_fc_w": jax.random.normal(ks[3], (E, E), jnp.float32) * 0.1,
        "id_fc_b": jax.random.normal(ks[4], (E,), jnp.float32) * 0.1,
        "cat_fc_w": jax.random.normal(ks[5], (E, E), jnp.float32) * 0.1,
        "cat_fc_b": jax.random.normal(ks[6], (E,), jnp.float32) * 0.1,
        "conv_w": [jax.random.normal(ks[7 + i], (F, 1, w, E), jnp.float32) * 0.1
                   for i, w in enumerate(window_sizes)],
        "conv_b": [jax.random.normal(ks[10 + i], (F,), jnp.float32) * 0.1
                   for i, _ in enumerate(window_sizes)],
        "comb_w": jax.random.normal(ks[13], (200, comb_in), jnp.float32) * 0.1,
        "comb_b": jax.random.normal(ks[14], (200,), jnp.float32) * 0.1,
    }
    return params


if __name__ == "__main__":
    # small, deterministic configuration
    B = 2
    embed_dim = 32
    sentence_size = 8
    window_sizes = (2, 3, 4)
    filter_num = 8
    mid_num = 50
    movie_category_num = 20
    movie_title_num = 100
    n_cats_per_movie = 3

    key = jax.random.PRNGKey(0)
    kp, k1, k2, k3 = jax.random.split(key, 4)
    params = init_params(kp, mid_num, movie_category_num, movie_title_num,
                         embed_dim, window_sizes, filter_num)

    movie_id = jax.random.randint(k1, (B,), 0, mid_num)
    movie_categories = jax.random.randint(k2, (B, n_cats_per_movie), 0, movie_category_num)
    movie_titles = jax.random.randint(k3, (B, sentence_size), 0, movie_title_num)

    out = movie_tower_pallas(params, movie_id, movie_categories, movie_titles,
                             window_sizes)
    out = jax.block_until_ready(out)

    ref = movie_tower_reference(params, movie_id, movie_categories, movie_titles,
                                window_sizes)
    # bf16 MXU operands vs f32 reference: allow ~1-2% relative error.
    np.testing.assert_allclose(np.asarray(out), np.asarray(ref),
                               rtol=2e-2, atol=2e-3)
    assert out.shape == (B, 200)
    print("KERNEL_OK")
</pallas_src>

<mosaic_0001>
module attributes {stable_mosaic.version = 11 : i64} {
  func.func @probe(%arg0: memref<8x128xf32, #tpu.memory_space<vmem>>, %arg1: memref<8x128xf32, #tpu.memory_space<vmem>>) attributes {dimension_semantics = [], scalar_prefetch = 0 : i64, scratch_operands = 0 : i64, tpu.core_type = #tpu.core_type<tc>} {
    %c0 = arith.constant 0 : index
    %c0_0 = arith.constant 0 : index
    %0 = vector.load %arg0[%c0, %c0_0] : memref<8x128xf32, #tpu.memory_space<vmem>>, vector<8x128xf32>
    %c1_i32 = arith.constant 1 : i32
    %1 = tpu.dynamic_rotate %0 by %c1_i32 dim 0 : vector<8x128xf32>, i32 -> vector<8x128xf32>
    %c0_1 = arith.constant 0 : index
    %c0_2 = arith.constant 0 : index
    %2 = vector.load %arg1[%c0_1, %c0_2] : memref<8x128xf32, #tpu.memory_space<vmem>>, vector<8x128xf32>
    tpu.vector_store %arg1[%c0_1, %c0_2], %1 {strides = array<i32>} : memref<8x128xf32, #tpu.memory_space<vmem>>, vector<8x128xf32>,
    return
  }
}

module attributes {stable_mosaic.version = 11 : i64} {
  func.func @kernel(%arg0: i32, %arg1: memref<2x32xbf16, #tpu.memory_space<vmem>>, %arg2: memref<2x32xbf16, #tpu.memory_space<vmem>>, %arg3: memref<16x32xbf16, #tpu.memory_space<vmem>>, %arg4: memref<32x32xbf16, #tpu.memory_space<vmem>>, %arg5: memref<1x32xf32, #tpu.memory_space<vmem>>, %arg6: memref<32x32xbf16, #tpu.memory_space<vmem>>, %arg7: memref<1x32xf32, #tpu.memory_space<vmem>>, %arg8: memref<32x512xbf16, #tpu.memory_space<vmem>>, %arg9: memref<8x128xf32, #tpu.memory_space<vmem>>, %arg10: memref<32x256xbf16, #tpu.memory_space<vmem>>, %arg11: memref<32x256xbf16, #tpu.memory_space<vmem>>, %arg12: memref<128x256xbf16, #tpu.memory_space<vmem>>, %arg13: memref<1x256xf32, #tpu.memory_space<vmem>>, %arg14: memref<2x256xf32, #tpu.memory_space<vmem>>) attributes {dimension_semantics = [#tpu.dimension_semantics<parallel>], iteration_bounds = array<i64: 1>, scalar_prefetch = 0 : i64, scratch_operands = 0 : i64, tpu.core_type = #tpu.core_type<tc>, window_params = [{transform_indices = @transform_0, window_bounds = array<i64: 2, 32>}, {transform_indices = @transform_1, window_bounds = array<i64: 2, 32>}, {transform_indices = @transform_2, window_bounds = array<i64: 16, 32>}, {pipeline_mode = #tpu.pipeline_mode<synchronous>, transform_indices = @transform_3, window_bounds = array<i64: 32, 32>}, {pipeline_mode = #tpu.pipeline_mode<synchronous>, transform_indices = @transform_4, window_bounds = array<i64: 1, 32>}, {pipeline_mode = #tpu.pipeline_mode<synchronous>, transform_indices = @transform_5, window_bounds = array<i64: 32, 32>}, {pipeline_mode = #tpu.pipeline_mode<synchronous>, transform_indices = @transform_6, window_bounds = array<i64: 1, 32>}, {pipeline_mode = #tpu.pipeline_mode<synchronous>, transform_indices = @transform_7, window_bounds = array<i64: 32, 512>}, {pipeline_mode = #tpu.pipeline_mode<synchronous>, transform_indices = @transform_8, window_bounds = array<i64: 8, 128>}, {pipeline_mode = #tpu.pipeline_mode<synchronous>, transform_indices = @transform_9, window_bounds = array<i64: 32, 256>}, {pipeline_mode = #tpu.pipeline_mode<synchronous>, transform_indices = @transform_10, window_bounds = array<i64: 32, 256>}, {pipeline_mode = #tpu.pipeline_mode<synchronous>, transform_indices = @transform_11, window_bounds = array<i64: 128, 256>}, {pipeline_mode = #tpu.pipeline_mode<synchronous>, transform_indices = @transform_12, window_bounds = array<i64: 1, 256>}, {transform_indices = @transform_13, window_bounds = array<i64: 2, 256>}]} {
    %c0 = arith.constant 0 : index
    %c0_0 = arith.constant 0 : index
    %0 = vector.load %arg1[%c0, %c0_0] : memref<2x32xbf16, #tpu.memory_space<vmem>>, vector<2x32xbf16>
    %c0_1 = arith.constant 0 : index
    %c0_2 = arith.constant 0 : index
    %1 = vector.load %arg4[%c0_1, %c0_2] : memref<32x32xbf16, #tpu.memory_space<vmem>>, vector<32x32xbf16>
    %cst = arith.constant dense<0.000000e+00> : vector<2x32xf32>
    %2 = tpu.matmul %0, %1, %cst {dimension_numbers = #tpu.dot_dimension_numbers<[1], [0], [0], [1], [0, 0, 1, 1], [], []>} : vector<2x32xbf16>, vector<32x32xbf16>, vector<2x32xf32> -> vector<2x32xf32>
    %c0_3 = arith.constant 0 : index
    %c0_4 = arith.constant 0 : index
    %3 = vector.load %arg5[%c0_3, %c0_4] : memref<1x32xf32, #tpu.memory_space<vmem>>, vector<1x32xf32>
    %4 = vector.broadcast %3 : vector<1x32xf32> to vector<2x32xf32>
    %5 = arith.addf %2, %4 : vector<2x32xf32>
    %cst_5 = arith.constant 0.000000e+00 : f32
    %6 = vector.broadcast %cst_5 : f32 to vector<2x32xf32>
    %7 = arith.maximumf %5, %6 : vector<2x32xf32>
    %c0_6 = arith.constant 0 : index
    %c0_7 = arith.constant 0 : index
    %8 = vector.load %arg2[%c0_6, %c0_7] : memref<2x32xbf16, #tpu.memory_space<vmem>>, vector<2x32xbf16>
    %c0_8 = arith.constant 0 : index
    %c0_9 = arith.constant 0 : index
    %9 = vector.load %arg6[%c0_8, %c0_9] : memref<32x32xbf16, #tpu.memory_space<vmem>>, vector<32x32xbf16>
    %cst_10 = arith.constant dense<0.000000e+00> : vector<2x32xf32>
    %10 = tpu.matmul %8, %9, %cst_10 {dimension_numbers = #tpu.dot_dimension_numbers<[1], [0], [0], [1], [0, 0, 1, 1], [], []>} : vector<2x32xbf16>, vector<32x32xbf16>, vector<2x32xf32> -> vector<2x32xf32>
    %c0_11 = arith.constant 0 : index
    %c0_12 = arith.constant 0 : index
    %11 = vector.load %arg7[%c0_11, %c0_12] : memref<1x32xf32, #tpu.memory_space<vmem>>, vector<1x32xf32>
    %12 = vector.broadcast %11 : vector<1x32xf32> to vector<2x32xf32>
    %13 = arith.addf %10, %12 : vector<2x32xf32>
    %cst_13 = arith.constant 0.000000e+00 : f32
    %14 = vector.broadcast %cst_13 : f32 to vector<2x32xf32>
    %15 = arith.maximumf %13, %14 : vector<2x32xf32>
    %c0_14 = arith.constant 0 : index
    %c0_15 = arith.constant 0 : index
    %16 = vector.load %arg3[%c0_14, %c0_15] : memref<16x32xbf16, #tpu.memory_space<vmem>>, vector<16x32xbf16>
    %c0_16 = arith.constant 0 : index
    %c0_17 = arith.constant 0 : index
    %17 = vector.load %arg8[%c0_16, %c0_17] : memref<32x512xbf16, #tpu.memory_space<vmem>>, vector<32x512xbf16>
    %cst_18 = arith.constant dense<0.000000e+00> : vector<16x512xf32>
    %18 = tpu.matmul %16, %17, %cst_18 {dimension_numbers = #tpu.dot_dimension_numbers<[1], [0], [0], [1], [0, 0, 1, 1], [], []>} : vector<16x32xbf16>, vector<32x512xbf16>, vector<16x512xf32> -> vector<16x512xf32>
    %19 = vector.extract_strided_slice %18 {offsets = [0, 0], sizes = [16, 128], strides = [1, 1]} : vector<16x512xf32> to vector<16x128xf32>
    %20 = vector.extract_strided_slice %18 {offsets = [0, 128], sizes = [16, 128], strides = [1, 1]} : vector<16x512xf32> to vector<16x128xf32>
    %21 = vector.extract_strided_slice %20 {offsets = [1, 0], sizes = [15, 128], strides = [1, 1]} : vector<16x128xf32> to vector<15x128xf32>
    %22 = vector.extract_strided_slice %20 {offsets = [0, 0], sizes = [1, 128], strides = [1, 1]} : vector<16x128xf32> to vector<1x128xf32>
    %23 = tpu.concatenate %21, %22 in 0 : vector<15x128xf32>, vector<1x128xf32> -> vector<16x128xf32>
    %24 = arith.addf %19, %23 : vector<16x128xf32>
    %25 = vector.extract_strided_slice %18 {offsets = [0, 256], sizes = [16, 128], strides = [1, 1]} : vector<16x512xf32> to vector<16x128xf32>
    %26 = vector.extract_strided_slice %25 {offsets = [2, 0], sizes = [14, 128], strides = [1, 1]} : vector<16x128xf32> to vector<14x128xf32>
    %27 = vector.extract_strided_slice %25 {offsets = [0, 0], sizes = [2, 128], strides = [1, 1]} : vector<16x128xf32> to vector<2x128xf32>
    %28 = tpu.concatenate %26, %27 in 0 : vector<14x128xf32>, vector<2x128xf32> -> vector<16x128xf32>
    %29 = arith.addf %24, %28 : vector<16x128xf32>
    %30 = vector.extract_strided_slice %18 {offsets = [0, 384], sizes = [16, 128], strides = [1, 1]} : vector<16x512xf32> to vector<16x128xf32>
    %31 = vector.extract_strided_slice %30 {offsets = [3, 0], sizes = [13, 128], strides = [1, 1]} : vector<16x128xf32> to vector<13x128xf32>
    %32 = vector.extract_strided_slice %30 {offsets = [0, 0], sizes = [3, 128], strides = [1, 1]} : vector<16x128xf32> to vector<3x128xf32>
    %33 = tpu.concatenate %31, %32 in 0 : vector<13x128xf32>, vector<3x128xf32> -> vector<16x128xf32>
    %34 = arith.addf %29, %33 : vector<16x128xf32>
    %35 = vector.shape_cast %34 : vector<16x128xf32> to vector<2x8x128xf32>
    %c0_19 = arith.constant 0 : index
    %c0_20 = arith.constant 0 : index
    %36 = vector.load %arg9[%c0_19, %c0_20] : memref<8x128xf32, #tpu.memory_space<vmem>>, vector<8x128xf32>
    %37 = vector.shape_cast %36 : vector<8x128xf32> to vector<1x8x128xf32>
    %38 = vector.broadcast %37 : vector<1x8x128xf32> to vector<2x8x128xf32>
    %39 = arith.addf %35, %38 : vector<2x8x128xf32>
    %cst_21 = arith.constant dense<0xFF800000> : vector<2x128xf32>
    %40 = vector.multi_reduction <maximumf>, %39, %cst_21 [1] : vector<2x8x128xf32> to vector<2x128xf32>
    %cst_22 = arith.constant 0.000000e+00 : f32
    %41 = vector.broadcast %cst_22 : f32 to vector<2x128xf32>
    %42 = arith.maximumf %40, %41 : vector<2x128xf32>
    %43 = arith.truncf %7 : vector<2x32xf32> to vector<2x32xbf16>
    %c0_23 = arith.constant 0 : index
    %c0_24 = arith.constant 0 : index
    %44 = vector.load %arg10[%c0_23, %c0_24] : memref<32x256xbf16, #tpu.memory_space<vmem>>, vector<32x256xbf16>
    %cst_25 = arith.constant dense<0.000000e+00> : vector<2x256xf32>
    %45 = tpu.matmul %43, %44, %cst_25 {dimension_numbers = #tpu.dot_dimension_numbers<[1], [0], [0], [1], [0, 0, 1, 1], [], []>} : vector<2x32xbf16>, vector<32x256xbf16>, vector<2x256xf32> -> vector<2x256xf32>
    %46 = arith.truncf %15 : vector<2x32xf32> to vector<2x32xbf16>
    %c0_26 = arith.constant 0 : index
    %c0_27 = arith.constant 0 : index
    %47 = vector.load %arg11[%c0_26, %c0_27] : memref<32x256xbf16, #tpu.memory_space<vmem>>, vector<32x256xbf16>
    %cst_28 = arith.constant dense<0.000000e+00> : vector<2x256xf32>
    %48 = tpu.matmul %46, %47, %cst_28 {dimension_numbers = #tpu.dot_dimension_numbers<[1], [0], [0], [1], [0, 0, 1, 1], [], []>} : vector<2x32xbf16>, vector<32x256xbf16>, vector<2x256xf32> -> vector<2x256xf32>
    %49 = arith.addf %45, %48 : vector<2x256xf32>
    %50 = arith.truncf %42 : vector<2x128xf32> to vector<2x128xbf16>
    %c0_29 = arith.constant 0 : index
    %c0_30 = arith.constant 0 : index
    %51 = vector.load %arg12[%c0_29, %c0_30] : memref<128x256xbf16, #tpu.memory_space<vmem>>, vector<128x256xbf16>
    %cst_31 = arith.constant dense<0.000000e+00> : vector<2x256xf32>
    %52 = tpu.matmul %50, %51, %cst_31 {dimension_numbers = #tpu.dot_dimension_numbers<[1], [0], [0], [1], [0, 0, 1, 1], [], []>} : vector<2x128xbf16>, vector<128x256xbf16>, vector<2x256xf32> -> vector<2x256xf32>
    %53 = arith.addf %49, %52 : vector<2x256xf32>
    %c0_32 = arith.constant 0 : index
    %c0_33 = arith.constant 0 : index
    %54 = vector.load %arg13[%c0_32, %c0_33] : memref<1x256xf32, #tpu.memory_space<vmem>>, vector<1x256xf32>
    %55 = vector.broadcast %54 : vector<1x256xf32> to vector<2x256xf32>
    %56 = arith.addf %53, %55 : vector<2x256xf32>
    %57 = math.tanh %56 : vector<2x256xf32>
    %58 = arith.mulf %57, %57 : vector<2x256xf32>
    %cst_34 = arith.constant dense<0.000000e+00> : vector<2xf32>
    %59 = vector.multi_reduction <add>, %58, %cst_34 [1] : vector<2x256xf32> to vector<2xf32>
    %60 = vector.shape_cast %59 : vector<2xf32> to vector<2x1xf32>
    %cst_35 = arith.constant 1.000000e-24 : f32
    %61 = vector.broadcast %cst_35 : f32 to vector<2x1xf32>
    %62 = arith.maximumf %60, %61 : vector<2x1xf32>
    %63 = math.rsqrt %62 : vector<2x1xf32>
    %64 = vector.broadcast %63 : vector<2x1xf32> to vector<2x256xf32>
    %65 = arith.mulf %57, %64 : vector<2x256xf32>
    %c0_36 = arith.constant 0 : index
    %c0_37 = arith.constant 0 : index
    %66 = vector.load %arg14[%c0_36, %c0_37] : memref<2x256xf32, #tpu.memory_space<vmem>>, vector<2x256xf32>
    tpu.vector_store %arg14[%c0_36, %c0_37], %65 {strides = array<i32>} : memref<2x256xf32, #tpu.memory_space<vmem>>, vector<2x256xf32>,
    return
  }
  func.func @transform_0(%arg0: i32) -> (i32, i32) {
    %c0_i32 = arith.constant 0 : i32
    %c0_i32_0 = arith.constant 0 : i32
    return %arg0, %c0_i32 : i32, i32
  }
  func.func @transform_1(%arg0: i32) -> (i32, i32) {
    %c0_i32 = arith.constant 0 : i32
    %c0_i32_0 = arith.constant 0 : i32
    return %arg0, %c0_i32 : i32, i32
  }
  func.func @transform_2(%arg0: i32) -> (i32, i32) {
    %c0_i32 = arith.constant 0 : i32
    %c0_i32_0 = arith.constant 0 : i32
    return %arg0, %c0_i32 : i32, i32
  }
  func.func @transform_3(%arg0: i32) -> (i32, i32) {
    %c0_i32 = arith.constant 0 : i32
    %c0_i32_0 = arith.constant 0 : i32
    %c0_i32_1 = arith.constant 0 : i32
    return %c0_i32, %c0_i32_0 : i32, i32
  }
  func.func @transform_4(%arg0: i32) -> (i32, i32) {
    %c0_i32 = arith.constant 0 : i32
    %c0_i32_0 = arith.constant 0 : i32
    %c0_i32_1 = arith.constant 0 : i32
    return %c0_i32, %c0_i32_0 : i32, i32
  }
  func.func @transform_5(%arg0: i32) -> (i32, i32) {
    %c0_i32 = arith.constant 0 : i32
    %c0_i32_0 = arith.constant 0 : i32
    %c0_i32_1 = arith.constant 0 : i32
    return %c0_i32, %c0_i32_0 : i32, i32
  }
  func.func @transform_6(%arg0: i32) -> (i32, i32) {
    %c0_i32 = arith.constant 0 : i32
    %c0_i32_0 = arith.constant 0 : i32
    %c0_i32_1 = arith.constant 0 : i32
    return %c0_i32, %c0_i32_0 : i32, i32
  }
  func.func @transform_7(%arg0: i32) -> (i32, i32) {
    %c0_i32 = arith.constant 0 : i32
    %c0_i32_0 = arith.constant 0 : i32
    %c0_i32_1 = arith.constant 0 : i32
    return %c0_i32, %c0_i32_0 : i32, i32
  }
  func.func @transform_8(%arg0: i32) -> (i32, i32) {
    %c0_i32 = arith.constant 0 : i32
    %c0_i32_0 = arith.constant 0 : i32
    %c0_i32_1 = arith.constant 0 : i32
    return %c0_i32, %c0_i32_0 : i32, i32
  }
  func.func @transform_9(%arg0: i32) -> (i32, i32) {
    %c0_i32 = arith.constant 0 : i32
    %c0_i32_0 = arith.constant 0 : i32
    %c0_i32_1 = arith.constant 0 : i32
    return %c0_i32, %c0_i32_0 : i32, i32
  }
  func.func @transform_10(%arg0: i32) -> (i32, i32) {
    %c0_i32 = arith.constant 0 : i32
    %c0_i32_0 = arith.constant 0 : i32
    %c0_i32_1 = arith.constant 0 : i32
    return %c0_i32, %c0_i32_0 : i32, i32
  }
  func.func @transform_11(%arg0: i32) -> (i32, i32) {
    %c0_i32 = arith.constant 0 : i32
    %c0_i32_0 = arith.constant 0 : i32
    %c0_i32_1 = arith.constant 0 : i32
    return %c0_i32, %c0_i32_0 : i32, i32
  }
  func.func @transform_12(%arg0: i32) -> (i32, i32) {
    %c0_i32 = arith.constant 0 : i32
    %c0_i32_0 = arith.constant 0 : i32
    %c0_i32_1 = arith.constant 0 : i32
    return %c0_i32, %c0_i32_0 : i32, i32
  }
  func.func @transform_13(%arg0: i32) -> (i32, i32) {
    %c0_i32 = arith.constant 0 : i32
    %c0_i32_0 = arith.constant 0 : i32
    return %arg0, %c0_i32 : i32, i32
  }
}

</mosaic_0001>

<llo_original>
// kernel: tpu_custom_call.1
$region0: #{tpu_custom_call.1}
  #allocation0 [shape = 'u32[]', space=smem, size = 0x4, offset = 0x4, fixed_abs, tag = 'smem constant byte address 0x4 - core index']
  #allocation1 [shape = 'u32[144,128]{1,0:T(1,128)}', space=vmem, size = 0x12000, scoped, tag = 'internal scratch']
  %s0 = inlined_call_operand.hbm [shape: f32[8,128], index: 0, kind: input, shape index: {}]
  %s1 = inlined_call_operand.hbm [shape: f32[8,128], index: 1, kind: output, shape index: {}]
  %s2 = sld [smem:[#allocation0]]
  $region18: #{tpu_custom_call.1} parent=0
    _
  %s4 = ssub.s32 1, %s2
  %s5 = scalar_select 0, %s4, %s2
  $region1: #{tpu_custom_call.1} parent=0
    #allocation2 [shape = 'u8[4096]{0}', space=vmem, size = 0x1000, scoped, tag = 'input window, operand 0, single buffered']
    #allocation3 [shape = 's32[1]{0}', space=sflag, size = 0x4, scoped, tag = 'scoped memory for tpu_custom_call.1']
    #allocation4 [shape = 's32[1]{0}', space=sflag, size = 0x4, scoped, tag = 'scoped memory for tpu_custom_call.1']
    #allocation5 [shape = 'u8[4096]{0}', space=vmem, size = 0x1000, scoped, tag = 'output window, operand 0, single buffered']
    %6 = vsyncpa [#allocation3], 0
    %7 = vsyncpa [#allocation4], 0
    // Predicated region
    $region2: #{tpu_custom_call.1} parent=1 // pred_check
      _
    $region3: #{tpu_custom_call.1} parent=1 // pred_check_branch
      %9 = sbr.rel (0) target = $region5
    $region4: #{tpu_custom_call.1} parent=1 // pred_region
      %s11 = ssub.s32 128, 128
      %12 = vsyncadd [#allocation3], %s11
      %s14 = sshll.u32 [#allocation2], 4
      %s15 = int_to_ptr.vmem [resolvable:$true] %s14
      %17 = dma.hbm_to_vmem [thread:$0]  %s0, 128, %s15, [#allocation3]
    $region5: #{tpu_custom_call.1} parent=1 // pred_fallthru
      _
    // Predicated region
    $region6: #{tpu_custom_call.1} parent=1 // pred_check
      _
    $region7: #{tpu_custom_call.1} parent=1 // pred_check_branch
      %19 = sbr.rel (0) target = $region9
    $region8: #{tpu_custom_call.1} parent=1 // pred_region
      %20 = dma.done [#allocation3], 128
    $region9: #{tpu_custom_call.1} parent=1 // pred_fallthru
      _
    %v21 = vld [vmem:[#allocation2] sm:$0xff]
    %v22 = vrot.slane %v21, 7
    %23 = vst [vmem:[#allocation5] sm:$0xff] %v22
    // Predicated region
    $region10: #{tpu_custom_call.1} parent=1 // pred_check
      _
    $region11: #{tpu_custom_call.1} parent=1 // pred_check_branch
      %25 = sbr.rel (0) target = $region13
    $region12: #{tpu_custom_call.1} parent=1 // pred_region
      %s27 = ssub.s32 128, 128
      %28 = vsyncadd [#allocation4], %s27
      %s30 = sshll.u32 [#allocation5], 4
      %s31 = int_to_ptr.vmem [resolvable:$true] %s30
      %33 = dma.vmem_to_hbm [thread:$0]  %s31, 128, %s1, [#allocation4]
    $region13: #{tpu_custom_call.1} parent=1 // pred_fallthru
      _
    // Predicated region
    $region14: #{tpu_custom_call.1} parent=1 // pred_check
      _
    $region15: #{tpu_custom_call.1} parent=1 // pred_check_branch
      %35 = sbr.rel (0) target = $region17
    $region16: #{tpu_custom_call.1} parent=1 // pred_region
      %36 = dma.done [#allocation4], 128
    $region17: #{tpu_custom_call.1} parent=1 // pred_fallthru
      _
    %37 = vsyncpa [#allocation3], 1
    %38 = vsyncpa [#allocation4], 1

// kernel: tpu_custom_call.1
$region0: #{tpu_custom_call.1}
  #allocation0 [shape = 'u32[]', space=smem, size = 0x4, offset = 0x4, fixed_abs, tag = 'smem constant byte address 0x4 - core index']
  #allocation1 [shape = 'u32[144,128]{1,0:T(1,128)}', space=vmem, size = 0x12000, scoped, tag = 'internal scratch']
  %s0 = inlined_call_operand.hbm [shape: bf16[2,32], index: 0, kind: input, shape index: {}]
  %s1 = inlined_call_operand.hbm [shape: bf16[2,32], index: 1, kind: input, shape index: {}]
  %s2 = inlined_call_operand.hbm [shape: bf16[16,32], index: 2, kind: input, shape index: {}]
  %s3 = inlined_call_operand.hbm [shape: bf16[32,32], index: 3, kind: input, shape index: {}]
  %s4 = inlined_call_operand.hbm [shape: f32[1,32], index: 4, kind: input, shape index: {}]
  %s5 = inlined_call_operand.hbm [shape: bf16[32,32], index: 5, kind: input, shape index: {}]
  %s6 = inlined_call_operand.hbm [shape: f32[1,32], index: 6, kind: input, shape index: {}]
  %s7 = inlined_call_operand.hbm [shape: bf16[32,512], index: 7, kind: input, shape index: {}]
  %s8 = inlined_call_operand.hbm [shape: f32[8,128], index: 8, kind: input, shape index: {}]
  %s9 = inlined_call_operand.vmem [shape: bf16[32,256], index: 9, kind: input, shape index: {}]
  %s10 = inlined_call_operand.hbm [shape: bf16[32,256], index: 10, kind: input, shape index: {}]
  %s11 = inlined_call_operand.hbm [shape: bf16[128,256], index: 11, kind: input, shape index: {}]
  %s12 = inlined_call_operand.vmem [shape: f32[1,256], index: 12, kind: input, shape index: {}]
  %s13 = inlined_call_operand.hbm [shape: f32[2,256], index: 13, kind: output, shape index: {}]
  %s14 = sld [smem:[#allocation0]]
  $region106: #{tpu_custom_call.1} parent=0
    _
  %s16 = ssub.s32 1, %s14
  %s17 = scalar_select 0, %s16, %s14
  $region1: #{tpu_custom_call.1} parent=0
    #allocation2 [shape = 'u8[512]{0}', space=vmem, size = 0x400, scoped, tag = 'input window, operand 0, single buffered']
    #allocation3 [shape = 's32[1]{0}', space=sflag, size = 0x4, scoped, tag = 'scoped memory for tpu_custom_call.1']
    #allocation4 [shape = 's32[1]{0}', space=sflag, size = 0x4, scoped, tag = 'scoped memory for tpu_custom_call.1']
    #allocation5 [shape = 'u8[512]{0}', space=vmem, size = 0x400, scoped, tag = 'input window, operand 1, single buffered']
    #allocation6 [shape = 's32[1]{0}', space=sflag, size = 0x4, scoped, tag = 'scoped memory for tpu_custom_call.1']
    #allocation7 [shape = 'u8[4096]{0}', space=vmem, size = 0x1000, scoped, tag = 'input window, operand 2, single buffered']
    #allocation8 [shape = 'u8[8192]{0}', space=vmem, size = 0x2000, scoped, tag = 'input window, operand 3, single buffered']
    #allocation9 [shape = 's32[1]{0}', space=sflag, size = 0x4, scoped, tag = 'scoped memory for tpu_custom_call.1']
    #allocation10 [shape = 'u8[512]{0}', space=vmem, size = 0x400, scoped, tag = 'input window, operand 4, single buffered']
    #allocation11 [shape = 'u8[8192]{0}', space=vmem, size = 0x2000, scoped, tag = 'input window, operand 5, single buffered']
    #allocation12 [shape = 's32[1]{0}', space=sflag, size = 0x4, scoped, tag = 'scoped memory for tpu_custom_call.1']
    #allocation13 [shape = 'u8[512]{0}', space=vmem, size = 0x400, scoped, tag = 'input window, operand 6, single buffered']
    #allocation14 [shape = 'u8[32768]{0}', space=vmem, size = 0x8000, scoped, tag = 'input window, operand 7, single buffered']
    #allocation15 [shape = 's32[1]{0}', space=sflag, size = 0x4, scoped, tag = 'scoped memory for tpu_custom_call.1']
    #allocation16 [shape = 'u8[4096]{0}', space=vmem, size = 0x1000, scoped, tag = 'input window, operand 8, single buffered']
    #allocation17 [shape = 'u8[16384]{0}', space=vmem, size = 0x4000, scoped, tag = 'input window, operand 10, single buffered']
    #allocation18 [shape = 's32[1]{0}', space=sflag, size = 0x4, scoped, tag = 'scoped memory for tpu_custom_call.1']
    #allocation19 [shape = 'u8[65536]{0}', space=vmem, size = 0x10000, scoped, tag = 'input window, operand 11, single buffered']
    #allocation20 [shape = 'u8[2048]{0}', space=vmem, size = 0x800, scoped, tag = 'output window, operand 0, single buffered']
    %18 = vsyncpa [#allocation3], 0
    %19 = vsyncpa [#allocation6], 0
    %20 = vsyncpa [#allocation9], 0
    %21 = vsyncpa [#allocation12], 0
    %22 = vsyncpa [#allocation15], 0
    %23 = vsyncpa [#allocation18], 0
    %24 = vsyncpa [#allocation4], 0
    // Predicated region
    $region2: #{tpu_custom_call.1} parent=1 // pred_check
      _
    $region3: #{tpu_custom_call.1} parent=1 // pred_check_branch
      %26 = sbr.rel (0) target = $region5
    $region4: #{tpu_custom_call.1} parent=1 // pred_region
      %s28 = ssub.s32 16, 16
      %29 = vsyncadd [#allocation3], %s28
      %s31 = sshll.u32 [#allocation2], 4
      %s32 = int_to_ptr.vmem [resolvable:$true] %s31
      %34 = dma.hbm_to_vmem [thread:$0]  %s0, 16, %s32, [#allocation3]
    $region5: #{tpu_custom_call.1} parent=1 // pred_fallthru
      _
    // Predicated region
    $region6: #{tpu_custom_call.1} parent=1 // pred_check
      _
    $region7: #{tpu_custom_call.1} parent=1 // pred_check_branch
      %36 = sbr.rel (0) target = $region9
    $region8: #{tpu_custom_call.1} parent=1 // pred_region
      %s38 = ssub.s32 16, 16
      %39 = vsyncadd [#allocation6], %s38
      %s41 = sshll.u32 [#allocation5], 4
      %s42 = int_to_ptr.vmem [resolvable:$true] %s41
      %44 = dma.hbm_to_vmem [thread:$0]  %s1, 16, %s42, [#allocation6]
    $region9: #{tpu_custom_call.1} parent=1 // pred_fallthru
      _
    // Predicated region
    $region10: #{tpu_custom_call.1} parent=1 // pred_check
      _
    $region11: #{tpu_custom_call.1} parent=1 // pred_check_branch
      %46 = sbr.rel (0) target = $region13
    $region12: #{tpu_custom_call.1} parent=1 // pred_region
      %s48 = ssub.s32 128, 128
      %49 = vsyncadd [#allocation6], %s48
      %s50 = sshll.u32 [#allocation7], 4
      %s51 = int_to_ptr.vmem [resolvable:$true] %s50
      %56 = dma.hbm_to_vmem [thread:$0]  %s2, 128, %s51, [#allocation6], 64, 64, 4
    $region13: #{tpu_custom_call.1} parent=1 // pred_fallthru
      _
    // Predicated region
    $region14: #{tpu_custom_call.1} parent=1 // pred_check
      _
    $region15: #{tpu_custom_call.1} parent=1 // pred_check_branch
      %58 = sbr.rel (0) target = $region17
    $region16: #{tpu_custom_call.1} parent=1 // pred_region
      %s60 = ssub.s32 256, 256
      %61 = vsyncadd [#allocation9], %s60
      %s62 = sshll.u32 [#allocation8], 4
      %s63 = int_to_ptr.vmem [resolvable:$true] %s62
      %68 = dma.hbm_to_vmem [thread:$0]  %s3, 256, %s63, [#allocation9], 64, 64, 4
    $region17: #{tpu_custom_call.1} parent=1 // pred_fallthru
      _
    // Predicated region
    $region18: #{tpu_custom_call.1} parent=1 // pred_check
      _
    $region19: #{tpu_custom_call.1} parent=1 // pred_check_branch
      %70 = sbr.rel (0) target = $region21
    $region20: #{tpu_custom_call.1} parent=1 // pred_region
      %s72 = ssub.s32 16, 16
      %73 = vsyncadd [#allocation9], %s72
      %s75 = sshll.u32 [#allocation10], 4
      %s76 = int_to_ptr.vmem [resolvable:$true] %s75
      %78 = dma.hbm_to_vmem [thread:$0]  %s4, 16, %s76, [#allocation9]
    $region21: #{tpu_custom_call.1} parent=1 // pred_fallthru
      _
    // Predicated region
    $region22: #{tpu_custom_call.1} parent=1 // pred_check
      _
    $region23: #{tpu_custom_call.1} parent=1 // pred_check_branch
      %80 = sbr.rel (0) target = $region25
    $region24: #{tpu_custom_call.1} parent=1 // pred_region
      %s82 = ssub.s32 256, 256
      %83 = vsyncadd [#allocation12], %s82
      %s84 = sshll.u32 [#allocation11], 4
      %s85 = int_to_ptr.vmem [resolvable:$true] %s84
      %90 = dma.hbm_to_vmem [thread:$0]  %s5, 256, %s85, [#allocation12], 64, 64, 4
    $region25: #{tpu_custom_call.1} parent=1 // pred_fallthru
      _
    // Predicated region
    $region26: #{tpu_custom_call.1} parent=1 // pred_check
      _
    $region27: #{tpu_custom_call.1} parent=1 // pred_check_branch
      %92 = sbr.rel (0) target = $region29
    $region28: #{tpu_custom_call.1} parent=1 // pred_region
      %s94 = ssub.s32 16, 16
      %95 = vsyncadd [#allocation12], %s94
      %s97 = sshll.u32 [#allocation13], 4
      %s98 = int_to_ptr.vmem [resolvable:$true] %s97
      %100 = dma.hbm_to_vmem [thread:$0]  %s6, 16, %s98, [#allocation12]
    $region29: #{tpu_custom_call.1} parent=1 // pred_fallthru
      _
    // Predicated region
    $region30: #{tpu_custom_call.1} parent=1 // pred_check
      _
    $region31: #{tpu_custom_call.1} parent=1 // pred_check_branch
      %102 = sbr.rel (0) target = $region33
    $region32: #{tpu_custom_call.1} parent=1 // pred_region
      %s104 = ssub.s32 1024, 1024
      %105 = vsyncadd [#allocation15], %s104
      %s106 = sshll.u32 [#allocation14], 4
      %s107 = int_to_ptr.vmem [resolvable:$true] %s106
      %112 = dma.hbm_to_vmem [thread:$0]  %s7, 1024, %s107, [#allocation15], 256, 256, 16
    $region33: #{tpu_custom_call.1} parent=1 // pred_fallthru
      _
    // Predicated region
    $region34: #{tpu_custom_call.1} parent=1 // pred_check
      _
    $region35: #{tpu_custom_call.1} parent=1 // pred_check_branch
      %114 = sbr.rel (0) target = $region37
    $region36: #{tpu_custom_call.1} parent=1 // pred_region
      %s116 = ssub.s32 128, 128
      %117 = vsyncadd [#allocation15], %s116
      %s119 = sshll.u32 [#allocation16], 4
      %s120 = int_to_ptr.vmem [resolvable:$true] %s119
      %122 = dma.hbm_to_vmem [thread:$0]  %s8, 128, %s120, [#allocation15]
    $region37: #{tpu_custom_call.1} parent=1 // pred_fallthru
      _
    // Predicated region
    $region38: #{tpu_custom_call.1} parent=1 // pred_check
      _
    $region39: #{tpu_custom_call.1} parent=1 // pred_check_branch
      %124 = sbr.rel (0) target = $region41
    $region40: #{tpu_custom_call.1} parent=1 // pred_region
      _
    $region41: #{tpu_custom_call.1} parent=1 // pred_fallthru
      _
    // Predicated region
    $region42: #{tpu_custom_call.1} parent=1 // pred_check
      _
    $region43: #{tpu_custom_call.1} parent=1 // pred_check_branch
      %126 = sbr.rel (0) target = $region45
    $region44: #{tpu_custom_call.1} parent=1 // pred_region
      %s128 = ssub.s32 512, 512
      %129 = vsyncadd [#allocation18], %s128
      %s130 = sshll.u32 [#allocation17], 4
      %s131 = int_to_ptr.vmem [resolvable:$true] %s130
      %136 = dma.hbm_to_vmem [thread:$0]  %s10, 512, %s131, [#allocation18], 128, 128, 8
    $region45: #{tpu_custom_call.1} parent=1 // pred_fallthru
      _
    // Predicated region
    $region46: #{tpu_custom_call.1} parent=1 // pred_check
      _
    $region47: #{tpu_custom_call.1} parent=1 // pred_check_branch
      %138 = sbr.rel (0) target = $region49
    $region48: #{tpu_custom_call.1} parent=1 // pred_region
      %s140 = ssub.s32 2048, 2048
      %141 = vsyncadd [#allocation18], %s140
      %s142 = sshll.u32 [#allocation19], 4
      %s143 = int_to_ptr.vmem [resolvable:$true] %s142
      %148 = dma.hbm_to_vmem [thread:$0]  %s11, 2048, %s143, [#allocation18], 128, 128, 8
    $region49: #{tpu_custom_call.1} parent=1 // pred_fallthru
      _
    // Predicated region
    $region50: #{tpu_custom_call.1} parent=1 // pred_check
      _
    $region51: #{tpu_custom_call.1} parent=1 // pred_check_branch
      %150 = sbr.rel (0) target = $region53
    $region52: #{tpu_custom_call.1} parent=1 // pred_region
      _
    $region53: #{tpu_custom_call.1} parent=1 // pred_fallthru
      _
    // Predicated region
    $region54: #{tpu_custom_call.1} parent=1 // pred_check
      _
    $region55: #{tpu_custom_call.1} parent=1 // pred_check_branch
      %152 = sbr.rel (0) target = $region57
    $region56: #{tpu_custom_call.1} parent=1 // pred_region
      %153 = dma.done [#allocation3], 16
    $region57: #{tpu_custom_call.1} parent=1 // pred_fallthru
      _
    // Predicated region
    $region58: #{tpu_custom_call.1} parent=1 // pred_check
      _
    $region59: #{tpu_custom_call.1} parent=1 // pred_check_branch
      %155 = sbr.rel (0) target = $region61
    $region60: #{tpu_custom_call.1} parent=1 // pred_region
      %156 = dma.done [#allocation6], 16
    $region61: #{tpu_custom_call.1} parent=1 // pred_fallthru
      _
    // Predicated region
    $region62: #{tpu_custom_call.1} parent=1 // pred_check
      _
    $region63: #{tpu_custom_call.1} parent=1 // pred_check_branch
      %158 = sbr.rel (0) target = $region65
    $region64: #{tpu_custom_call.1} parent=1 // pred_region
      %159 = dma.done [#allocation6], 128
    $region65: #{tpu_custom_call.1} parent=1 // pred_fallthru
      _
    // Predicated region
    $region66: #{tpu_custom_call.1} parent=1 // pred_check
      _
    $region67: #{tpu_custom_call.1} parent=1 // pred_check_branch
      %161 = sbr.rel (0) target = $region69
    $region68: #{tpu_custom_call.1} parent=1 // pred_region
      %162 = dma.done [#allocation9], 256
    $region69: #{tpu_custom_call.1} parent=1 // pred_fallthru
      _
    // Predicated region
    $region70: #{tpu_custom_call.1} parent=1 // pred_check
      _
    $region71: #{tpu_custom_call.1} parent=1 // pred_check_branch
      %164 = sbr.rel (0) target = $region73
    $region72: #{tpu_custom_call.1} parent=1 // pred_region
      %165 = dma.done [#allocation9], 16
    $region73: #{tpu_custom_call.1} parent=1 // pred_fallthru
      _
    // Predicated region
    $region74: #{tpu_custom_call.1} parent=1 // pred_check
      _
    $region75: #{tpu_custom_call.1} parent=1 // pred_check_branch
      %167 = sbr.rel (0) target = $region77
    $region76: #{tpu_custom_call.1} parent=1 // pred_region
      %168 = dma.done [#allocation12], 256
    $region77: #{tpu_custom_call.1} parent=1 // pred_fallthru
      _
    // Predicated region
    $region78: #{tpu_custom_call.1} parent=1 // pred_check
      _
    $region79: #{tpu_custom_call.1} parent=1 // pred_check_branch
      %170 = sbr.rel (0) target = $region81
    $region80: #{tpu_custom_call.1} parent=1 // pred_region
      %171 = dma.done [#allocation12], 16
    $region81: #{tpu_custom_call.1} parent=1 // pred_fallthru
      _
    // Predicated region
    $region82: #{tpu_custom_call.1} parent=1 // pred_check
      _
    $region83: #{tpu_custom_call.1} parent=1 // pred_check_branch
      %173 = sbr.rel (0) target = $region85
    $region84: #{tpu_custom_call.1} parent=1 // pred_region
      %174 = dma.done [#allocation15], 1024
    $region85: #{tpu_custom_call.1} parent=1 // pred_fallthru
      _
    // Predicated region
    $region86: #{tpu_custom_call.1} parent=1 // pred_check
      _
    $region87: #{tpu_custom_call.1} parent=1 // pred_check_branch
      %176 = sbr.rel (0) target = $region89
    $region88: #{tpu_custom_call.1} parent=1 // pred_region
      %177 = dma.done [#allocation15], 128
    $region89: #{tpu_custom_call.1} parent=1 // pred_fallthru
      _
    // Predicated region
    $region90: #{tpu_custom_call.1} parent=1 // pred_check
      _
    $region91: #{tpu_custom_call.1} parent=1 // pred_check_branch
      %179 = sbr.rel (0) target = $region93
    $region92: #{tpu_custom_call.1} parent=1 // pred_region
      %180 = dma.done [#allocation18], 512
    $region93: #{tpu_custom_call.1} parent=1 // pred_fallthru
      _
    // Predicated region
    $region94: #{tpu_custom_call.1} parent=1 // pred_check
      _
    $region95: #{tpu_custom_call.1} parent=1 // pred_check_branch
      %182 = sbr.rel (0) target = $region97
    $region96: #{tpu_custom_call.1} parent=1 // pred_region
      %183 = dma.done [#allocation18], 2048
    $region97: #{tpu_custom_call.1} parent=1 // pred_fallthru
      _
    %v185 = vld [vmem:[#allocation2] sm:$0x1]
    %v186 = vld [vmem:[#allocation8] sm:$0xf]
    %v187 = vld [vmem:[#allocation8 + $0x4] sm:$0xf]
    %v188 = vld [vmem:[#allocation8 + $0x8] sm:$0xf]
    %v189 = vld [vmem:[#allocation8 + $0xc] sm:$0xf]
    %v190 = vld [vmem:[#allocation10] sm:$0x1]
    %v192 = vlaneseq
    %v193 = vshrl.u32 %v192, 7
    %v194 = vsub.s32 0, %v193
    %v195 = vrot.slane %v190, %v194
    %v201 = vunpack.c.l.b16 %v186
    %v202 = vunpack.c.l.b16 %v187
    %v203 = vunpack.c.l.b16 %v188
    %v204 = vunpack.c.l.b16 %v189
    %v205 = vpack.c.b16 %v202, %v201
    %v206 = vpack.c.b16 %v204, %v203
    %vm209 = vcmask 261120
    %v211 = vsel %vm209, %v185, 0
    %213 = vmatprep.subr.bf16.mxu0 0
    %214 = vmatpush1.bf16.msra.mxu0 %v205
    %215 = vmatprep.subr.bf16.mxu0 0
    %216 = vmatpush1.bf16.msra.mxu0 %v206
    %217 = vmatprep.subr.bf16.mxu0 0
    %218 = vmatpush1.bf16.msra.mxu0 0
    %219 = vmatprep.subr.bf16.mxu0 0
    %220 = vmatpush1.bf16.msra.mxu0 0
    %221 = vmatprep.subr.bf16.mxu0 0
    %222 = vmatpush1.bf16.msra.mxu0 0
    %223 = vmatprep.subr.bf16.mxu0 0
    %224 = vmatpush1.bf16.msra.mxu0 0
    %225 = vmatprep.subr.bf16.mxu0 0
    %226 = vmatpush1.bf16.msra.mxu0 0
    %227 = vmatprep.subr.bf16.mxu0 0
    %228 = vmatpush1.bf16.msra.mxu0 0
    %229 = vmatprep.subr.bf16.mxu0 0
    %230 = vmatpush1.bf16.msra.mxu0 0
    %231 = vmatprep.subr.bf16.mxu0 0
    %232 = vmatpush1.bf16.msra.mxu0 0
    %233 = vmatprep.subr.bf16.mxu0 0
    %234 = vmatpush1.bf16.msra.mxu0 0
    %235 = vmatprep.subr.bf16.mxu0 0
    %236 = vmatpush1.bf16.msra.mxu0 0
    %237 = vmatprep.subr.bf16.mxu0 0
    %238 = vmatpush1.bf16.msra.mxu0 0
    %239 = vmatprep.subr.bf16.mxu0 0
    %240 = vmatpush1.bf16.msra.mxu0 0
    %241 = vmatprep.subr.bf16.mxu0 0
    %242 = vmatpush1.bf16.msra.mxu0 0
    %243 = vmatprep.subr.bf16.mxu0 0
    %244 = vmatpush1.bf16.msra.mxu0 0
    %245 = vmatprep.mubr.bf16.mxu0 0
    %246 = vmatmul.mubr.bf16.gmra.mrb[0].mxu0 %v211
    %v247 = vpop.f32.mrb[0].mxu0
    %v248 = vadd.f32 %v195, %v247
    %v249 = vpop.f32.mrb[0].mxu0
    %v250 = vpop.f32.mrb[0].mxu0
    %v251 = vpop.f32.mrb[0].mxu0
    %252 = vdwg.mxu0
    %v253 = vmax.f32 %v248, 0.0
    %v254 = vld [vmem:[#allocation5] sm:$0x1]
    %v255 = vld [vmem:[#allocation11] sm:$0xf]
    %v256 = vld [vmem:[#allocation11 + $0x4] sm:$0xf]
    %v257 = vld [vmem:[#allocation11 + $0x8] sm:$0xf]
    %v258 = vld [vmem:[#allocation11 + $0xc] sm:$0xf]
    %v259 = vld [vmem:[#allocation13] sm:$0x1]
    %v261 = vlaneseq
    %v262 = vshrl.u32 %v261, 7
    %v263 = vsub.s32 0, %v262
    %v264 = vrot.slane %v259, %v263
    %v270 = vunpack.c.l.b16 %v255
    %v271 = vunpack.c.l.b16 %v256
    %v272 = vunpack.c.l.b16 %v257
    %v273 = vunpack.c.l.b16 %v258
    %v274 = vpack.c.b16 %v271, %v270
    %v275 = vpack.c.b16 %v273, %v272
    %v279 = vsel %vm209, %v254, 0
    %281 = vmatprep.subr.bf16.mxu0 0
    %282 = vmatpush1.bf16.msra.mxu0 %v274
    %283 = vmatprep.subr.bf16.mxu0 0
    %284 = vmatpush1.bf16.msra.mxu0 %v275
    %285 = vmatprep.subr.bf16.mxu0 0
    %286 = vmatpush1.bf16.msra.mxu0 0
    %287 = vmatprep.subr.bf16.mxu0 0
    %288 = vmatpush1.bf16.msra.mxu0 0
    %289 = vmatprep.subr.bf16.mxu0 0
    %290 = vmatpush1.bf16.msra.mxu0 0
    %291 = vmatprep.subr.bf16.mxu0 0
    %292 = vmatpush1.bf16.msra.mxu0 0
    %293 = vmatprep.subr.bf16.mxu0 0
    %294 = vmatpush1.bf16.msra.mxu0 0
    %295 = vmatprep.subr.bf16.mxu0 0
    %296 = vmatpush1.bf16.msra.mxu0 0
    %297 = vmatprep.subr.bf16.mxu0 0
    %298 = vmatpush1.bf16.msra.mxu0 0
    %299 = vmatprep.subr.bf16.mxu0 0
    %300 = vmatpush1.bf16.msra.mxu0 0
    %301 = vmatprep.subr.bf16.mxu0 0
    %302 = vmatpush1.bf16.msra.mxu0 0
    %303 = vmatprep.subr.bf16.mxu0 0
    %304 = vmatpush1.bf16.msra.mxu0 0
    %305 = vmatprep.subr.bf16.mxu0 0
    %306 = vmatpush1.bf16.msra.mxu0 0
    %307 = vmatprep.subr.bf16.mxu0 0
    %308 = vmatpush1.bf16.msra.mxu0 0
    %309 = vmatprep.subr.bf16.mxu0 0
    %310 = vmatpush1.bf16.msra.mxu0 0
    %311 = vmatprep.subr.bf16.mxu0 0
    %312 = vmatpush1.bf16.msra.mxu0 0
    %313 = vmatprep.mubr.bf16.mxu0 0
    %314 = vmatmul.mubr.bf16.gmra.mrb[0].mxu0 %v279
    %v315 = vpop.f32.mrb[0].mxu0
    %v316 = vadd.f32 %v264, %v315
    %v317 = vpop.f32.mrb[0].mxu0
    %v318 = vpop.f32.mrb[0].mxu0
    %v319 = vpop.f32.mrb[0].mxu0
    %320 = vdwg.mxu0
    %v321 = vmax.f32 %v316, 0.0
    %v322 = vld [vmem:[#allocation7] sm:$0xf]
    %v323 = vld [vmem:[#allocation7 + $0x4] sm:$0xf]
    %v324 = vld [vmem:[#allocation14] sm:$0xff]
    %v325 = vld [vmem:[#allocation14 + $0x8] sm:$0xff]
    %v326 = vld [vmem:[#allocation14 + $0x10] sm:$0xff]
    %v327 = vld [vmem:[#allocation14 + $0x18] sm:$0xff]
    %v328 = vld [vmem:[#allocation14 + $0x20] sm:$0xff]
    %v329 = vld [vmem:[#allocation14 + $0x28] sm:$0xff]
    %v330 = vld [vmem:[#allocation14 + $0x30] sm:$0xff]
    %v331 = vld [vmem:[#allocation14 + $0x38] sm:$0xff]
    %v334 = vunpack.c.l.b16 %v322
    %v335 = vunpack.c.l.b16 %v323
    %v336 = vpack.c.b16 %v335, %v334
    %v345 = vunpack.c.l.b16 %v324
    %v346 = vunpack.c.h.b16 %v324
    %v347 = vunpack.c.l.b16 %v325
    %v348 = vunpack.c.h.b16 %v325
    %v349 = vunpack.c.l.b16 %v326
    %v350 = vunpack.c.h.b16 %v326
    %v351 = vunpack.c.l.b16 %v327
    %v352 = vunpack.c.h.b16 %v327
    %v353 = vunpack.c.l.b16 %v328
    %v354 = vunpack.c.h.b16 %v328
    %v355 = vunpack.c.l.b16 %v329
    %v356 = vunpack.c.h.b16 %v329
    %v357 = vunpack.c.l.b16 %v330
    %v358 = vunpack.c.h.b16 %v330
    %v359 = vunpack.c.l.b16 %v331
    %v360 = vunpack.c.h.b16 %v331
    %v361 = vpack.c.b16 %v349, %v345
    %v362 = vpack.c.b16 %v350, %v346
    %v363 = vpack.c.b16 %v351, %v347
    %v364 = vpack.c.b16 %v352, %v348
    %v365 = vpack.c.b16 %v357, %v353
    %v366 = vpack.c.b16 %v358, %v354
    %v367 = vpack.c.b16 %v359, %v355
    %v368 = vpack.c.b16 %v360, %v356
    %v378 = vsel %vm209, %v336, 0
    %380 = vmatprep.subr.bf16.mxu0 %v362
    %381 = vmatpush1.bf16.msra.mxu0 %v361
    %382 = vmatprep.subr.bf16.mxu0 %v366
    %383 = vmatpush1.bf16.msra.mxu0 %v365
    %384 = vmatprep.subr.bf16.mxu0 0
    %385 = vmatpush1.bf16.msra.mxu0 0
    %386 = vmatprep.subr.bf16.mxu0 0
    %387 = vmatpush1.bf16.msra.mxu0 0
    %388 = vmatprep.subr.bf16.mxu0 0
    %389 = vmatpush1.bf16.msra.mxu0 0
    %390 = vmatprep.subr.bf16.mxu0 0
    %391 = vmatpush1.bf16.msra.mxu0 0
    %392 = vmatprep.subr.bf16.mxu0 0
    %393 = vmatpush1.bf16.msra.mxu0 0
    %394 = vmatprep.subr.bf16.mxu0 0
    %395 = vmatpush1.bf16.msra.mxu0 0
    %396 = vmatprep.subr.bf16.mxu0 0
    %397 = vmatpush1.bf16.msra.mxu0 0
    %398 = vmatprep.subr.bf16.mxu0 0
    %399 = vmatpush1.bf16.msra.mxu0 0
    %400 = vmatprep.subr.bf16.mxu0 0
    %401 = vmatpush1.bf16.msra.mxu0 0
    %402 = vmatprep.subr.bf16.mxu0 0
    %403 = vmatpush1.bf16.msra.mxu0 0
    %404 = vmatprep.subr.bf16.mxu0 0
    %405 = vmatpush1.bf16.msra.mxu0 0
    %406 = vmatprep.subr.bf16.mxu0 0
    %407 = vmatpush1.bf16.msra.mxu0 0
    %408 = vmatprep.subr.bf16.mxu0 0
    %409 = vmatpush1.bf16.msra.mxu0 0
    %410 = vmatprep.subr.bf16.mxu0 0
    %411 = vmatpush1.bf16.msra.mxu0 0
    %412 = vmatprep.mubr.bf16.mxu0 0
    %413 = vmatmul.mubr.bf16.gmra.mrb[0].mxu0 %v378
    %v414 = vpop.f32.mrb[0].mxu0
    %v415 = vadd.f32 0.0, %v414
    %v416 = vpop.f32.mrb[0].mxu0
    %v417 = vadd.f32 0.0, %v416
    %v418 = vpop.f32.mrb[0].mxu0
    %v419 = vadd.f32 0.0, %v418
    %v420 = vpop.f32.mrb[0].mxu0
    %v421 = vadd.f32 0.0, %v420
    %422 = vdwg.mxu0
    %423 = vmatprep.subr.bf16.mxu0 %v364
    %424 = vmatpush1.bf16.msra.mxu0 %v363
    %425 = vmatprep.subr.bf16.mxu0 %v368
    %426 = vmatpush1.bf16.msra.mxu0 %v367
    %427 = vmatprep.subr.bf16.mxu0 0
    %428 = vmatpush1.bf16.msra.mxu0 0
    %429 = vmatprep.subr.bf16.mxu0 0
    %430 = vmatpush1.bf16.msra.mxu0 0
    %431 = vmatprep.subr.bf16.mxu0 0
    %432 = vmatpush1.bf16.msra.mxu0 0
    %433 = vmatprep.subr.bf16.mxu0 0
    %434 = vmatpush1.bf16.msra.mxu0 0
    %435 = vmatprep.subr.bf16.mxu0 0
    %436 = vmatpush1.bf16.msra.mxu0 0
    %437 = vmatprep.subr.bf16.mxu0 0
    %438 = vmatpush1.bf16.msra.mxu0 0
    %439 = vmatprep.subr.bf16.mxu0 0
    %440 = vmatpush1.bf16.msra.mxu0 0
    %441 = vmatprep.subr.bf16.mxu0 0
    %442 = vmatpush1.bf16.msra.mxu0 0
    %443 = vmatprep.subr.bf16.mxu0 0
    %444 = vmatpush1.bf16.msra.mxu0 0
    %445 = vmatprep.subr.bf16.mxu0 0
    %446 = vmatpush1.bf16.msra.mxu0 0
    %447 = vmatprep.subr.bf16.mxu0 0
    %448 = vmatpush1.bf16.msra.mxu0 0
    %449 = vmatprep.subr.bf16.mxu0 0
    %450 = vmatpush1.bf16.msra.mxu0 0
    %451 = vmatprep.subr.bf16.mxu0 0
    %452 = vmatpush1.bf16.msra.mxu0 0
    %453 = vmatprep.subr.bf16.mxu0 0
    %454 = vmatpush1.bf16.msra.mxu0 0
    %455 = vmatprep.mubr.bf16.mxu0 0
    %456 = vmatmul.mubr.bf16.gmra.mrb[0].mxu0 %v378
    %v457 = vpop.f32.mrb[0].mxu0
    %v458 = vadd.f32 0.0, %v457
    %v459 = vpop.f32.mrb[0].mxu0
    %v460 = vadd.f32 0.0, %v459
    %v461 = vpop.f32.mrb[0].mxu0
    %v462 = vadd.f32 0.0, %v461
    %v463 = vpop.f32.mrb[0].mxu0
    %v464 = vadd.f32 0.0, %v463
    %465 = vdwg.mxu0
    %vm468 = vcmask 1046528
    %v469 = vrot.slane %v417, 1
    %v470 = vrot.slane %v421, 1
    %v471 = vsel %vm468, %v469, %v470
    %v475 = vsel %vm468, %v470, %v469
    %v476 = vadd.f32 %v415, %v471
    %v477 = vadd.f32 %v419, %v475
    %vm480 = vcmask 1045504
    %v481 = vrot.slane %v458, 2
    %v482 = vrot.slane %v462, 2
    %v483 = vsel %vm480, %v481, %v482
    %v487 = vsel %vm480, %v482, %v481
    %v488 = vadd.f32 %v476, %v483
    %v489 = vadd.f32 %v477, %v487
    %vm492 = vcmask 1044480
    %v493 = vrot.slane %v460, 3
    %v494 = vrot.slane %v464, 3
    %v495 = vsel %vm492, %v493, %v494
    %v499 = vsel %vm492, %v494, %v493
    %v500 = vadd.f32 %v488, %v495
    %v501 = vadd.f32 %v489, %v499
    %v502 = vld [vmem:[#allocation16] sm:$0xff]
    %v503 = vadd.f32 %v500, %v502
    %v504 = vadd.f32 %v501, %v502
    %v505 = vrot.slane %v503, 4
    %v506 = vmax.f32 %v503, %v505
    %v507 = vrot.slane %v506, 2
    %v508 = vmax.f32 %v506, %v507
    %v509 = vrot.slane %v508, 1
    %v510 = vmax.f32 %v508, %v509
    %v511 = vrot.slane %v504, 4
    %v512 = vmax.f32 %v504, %v511
    %v513 = vrot.slane %v512, 2
    %v514 = vmax.f32 %v512, %v513
    %v515 = vrot.slane %v514, 1
    %v516 = vmax.f32 %v514, %v515
    %v517 = vmax.f32 %v510, 0.0
    %v518 = vmax.f32 %v516, 0.0
    %v519 = vpack.c.bf16 %v253, %v253
    %v520 = vld [vmem:[%s9] sm:$0xff]
    %v521 = vld [vmem:[%s9 + $0x8] sm:$0xff]
    %v522 = vld [vmem:[%s9 + $0x10] sm:$0xff]
    %v523 = vld [vmem:[%s9 + $0x18] sm:$0xff]
    %v524 = vpack.c.bf16 %v321, %v321
    %v525 = vld [vmem:[#allocation17] sm:$0xff]
    %v526 = vld [vmem:[#allocation17 + $0x8] sm:$0xff]
    %v527 = vld [vmem:[#allocation17 + $0x10] sm:$0xff]
    %v528 = vld [vmem:[#allocation17 + $0x18] sm:$0xff]
    %v533 = vunpack.c.l.b16 %v525
    %v534 = vunpack.c.h.b16 %v525
    %v535 = vunpack.c.l.b16 %v526
    %v536 = vunpack.c.h.b16 %v526
    %v537 = vunpack.c.l.b16 %v527
    %v538 = vunpack.c.h.b16 %v527
    %v539 = vunpack.c.l.b16 %v528
    %v540 = vunpack.c.h.b16 %v528
    %v541 = vpack.c.b16 %v535, %v533
    %v542 = vpack.c.b16 %v536, %v534
    %v543 = vpack.c.b16 %v539, %v537
    %v544 = vpack.c.b16 %v540, %v538
    %v550 = vsel %vm209, %v524, 0
    %552 = vmatprep.subr.bf16.mxu0 %v542
    %553 = vmatpush1.bf16.msra.mxu0 %v541
    %554 = vmatprep.subr.bf16.mxu0 %v544
    %555 = vmatpush1.bf16.msra.mxu0 %v543
    %556 = vmatprep.subr.bf16.mxu0 0
    %557 = vmatpush1.bf16.msra.mxu0 0
    %558 = vmatprep.subr.bf16.mxu0 0
    %559 = vmatpush1.bf16.msra.mxu0 0
    %560 = vmatprep.subr.bf16.mxu0 0
    %561 = vmatpush1.bf16.msra.mxu0 0
    %562 = vmatprep.subr.bf16.mxu0 0
    %563 = vmatpush1.bf16.msra.mxu0 0
    %564 = vmatprep.subr.bf16.mxu0 0
    %565 = vmatpush1.bf16.msra.mxu0 0
    %566 = vmatprep.subr.bf16.mxu0 0
    %567 = vmatpush1.bf16.msra.mxu0 0
    %568 = vmatprep.subr.bf16.mxu0 0
    %569 = vmatpush1.bf16.msra.mxu0 0
    %570 = vmatprep.subr.bf16.mxu0 0
    %571 = vmatpush1.bf16.msra.mxu0 0
    %572 = vmatprep.subr.bf16.mxu0 0
    %573 = vmatpush1.bf16.msra.mxu0 0
    %574 = vmatprep.subr.bf16.mxu0 0
    %575 = vmatpush1.bf16.msra.mxu0 0
    %576 = vmatprep.subr.bf16.mxu0 0
    %577 = vmatpush1.bf16.msra.mxu0 0
    %578 = vmatprep.subr.bf16.mxu0 0
    %579 = vmatpush1.bf16.msra.mxu0 0
    %580 = vmatprep.subr.bf16.mxu0 0
    %581 = vmatpush1.bf16.msra.mxu0 0
    %582 = vmatprep.subr.bf16.mxu0 0
    %583 = vmatpush1.bf16.msra.mxu0 0
    %584 = vmatprep.mubr.bf16.mxu0 0
    %585 = vmatmul.mubr.bf16.gmra.mrb[0].mxu0 %v550
    %v586 = vpop.f32.mrb[0].mxu0
    %v587 = vadd.f32 0.0, %v586
    %v588 = vpop.f32.mrb[0].mxu0
    %v589 = vadd.f32 0.0, %v588
    %v590 = vpop.f32.mrb[0].mxu0
    %v591 = vpop.f32.mrb[0].mxu0
    %592 = vdwg.mxu0
    %v597 = vunpack.c.l.b16 %v520
    %v598 = vunpack.c.h.b16 %v520
    %v599 = vunpack.c.l.b16 %v521
    %v600 = vunpack.c.h.b16 %v521
    %v601 = vunpack.c.l.b16 %v522
    %v602 = vunpack.c.h.b16 %v522
    %v603 = vunpack.c.l.b16 %v523
    %v604 = vunpack.c.h.b16 %v523
    %v605 = vpack.c.b16 %v599, %v597
    %v606 = vpack.c.b16 %v600, %v598
    %v607 = vpack.c.b16 %v603, %v601
    %v608 = vpack.c.b16 %v604, %v602
    %v614 = vsel %vm209, %v519, 0
    %616 = vmatprep.subr.bf16.mxu0 %v606
    %617 = vmatpush1.bf16.msra.mxu0 %v605
    %618 = vmatprep.subr.bf16.mxu0 %v608
    %619 = vmatpush1.bf16.msra.mxu0 %v607
    %620 = vmatprep.subr.bf16.mxu0 0
    %621 = vmatpush1.bf16.msra.mxu0 0
    %622 = vmatprep.subr.bf16.mxu0 0
    %623 = vmatpush1.bf16.msra.mxu0 0
    %624 = vmatprep.subr.bf16.mxu0 0
    %625 = vmatpush1.bf16.msra.mxu0 0
    %626 = vmatprep.subr.bf16.mxu0 0
    %627 = vmatpush1.bf16.msra.mxu0 0
    %628 = vmatprep.subr.bf16.mxu0 0
    %629 = vmatpush1.bf16.msra.mxu0 0
    %630 = vmatprep.subr.bf16.mxu0 0
    %631 = vmatpush1.bf16.msra.mxu0 0
    %632 = vmatprep.subr.bf16.mxu0 0
    %633 = vmatpush1.bf16.msra.mxu0 0
    %634 = vmatprep.subr.bf16.mxu0 0
    %635 = vmatpush1.bf16.msra.mxu0 0
    %636 = vmatprep.subr.bf16.mxu0 0
    %637 = vmatpush1.bf16.msra.mxu0 0
    %638 = vmatprep.subr.bf16.mxu0 0
    %639 = vmatpush1.bf16.msra.mxu0 0
    %640 = vmatprep.subr.bf16.mxu0 0
    %641 = vmatpush1.bf16.msra.mxu0 0
    %642 = vmatprep.subr.bf16.mxu0 0
    %643 = vmatpush1.bf16.msra.mxu0 0
    %644 = vmatprep.subr.bf16.mxu0 0
    %645 = vmatpush1.bf16.msra.mxu0 0
    %646 = vmatprep.subr.bf16.mxu0 0
    %647 = vmatpush1.bf16.msra.mxu0 0
    %648 = vmatprep.mubr.bf16.mxu0 0
    %649 = vmatmul.mubr.bf16.gmra.mrb[0].mxu0 %v614
    %v650 = vpop.f32.mrb[0].mxu0
    %v651 = vadd.f32 %v587, %v650
    %v652 = vpop.f32.mrb[0].mxu0
    %v653 = vadd.f32 %v589, %v652
    %v654 = vpop.f32.mrb[0].mxu0
    %v655 = vpop.f32.mrb[0].mxu0
    %656 = vdwg.mxu0
    %v657 = vpack.c.bf16 %v517, %v517
    %v658 = vpack.c.bf16 %v518, %v518
    %v659 = vld [vmem:[#allocation19] sm:$0xff]
    %v660 = vld [vmem:[#allocation19 + $0x8] sm:$0xff]
    %v661 = vld [vmem:[#allocation19 + $0x10] sm:$0xff]
    %v662 = vld [vmem:[#allocation19 + $0x18] sm:$0xff]
    %v663 = vld [vmem:[#allocation19 + $0x20] sm:$0xff]
    %v664 = vld [vmem:[#allocation19 + $0x28] sm:$0xff]
    %v665 = vld [vmem:[#allocation19 + $0x30] sm:$0xff]
    %v666 = vld [vmem:[#allocation19 + $0x38] sm:$0xff]
    %v667 = vld [vmem:[#allocation19 + $0x40] sm:$0xff]
    %v668 = vld [vmem:[#allocation19 + $0x48] sm:$0xff]
    %v669 = vld [vmem:[#allocation19 + $0x50] sm:$0xff]
    %v670 = vld [vmem:[#allocation19 + $0x58] sm:$0xff]
    %v671 = vld [vmem:[#allocation19 + $0x60] sm:$0xff]
    %v672 = vld [vmem:[#allocation19 + $0x68] sm:$0xff]
    %v673 = vld [vmem:[#allocation19 + $0x70] sm:$0xff]
    %v674 = vld [vmem:[#allocation19 + $0x78] sm:$0xff]
    %v677 = vunpack.c.l.b16 %v657
    %v678 = vunpack.c.l.b16 %v658
    %vm679 = vcmask 1041409
    %v680 = vsel %vm679, %v678, %v677
    %v681 = vpack.c.b16 %v680, %v680
    %v699 = vunpack.c.l.b16 %v659
    %v700 = vunpack.c.h.b16 %v659
    %v701 = vunpack.c.l.b16 %v660
    %v702 = vunpack.c.h.b16 %v660
    %v703 = vunpack.c.l.b16 %v661
    %v704 = vunpack.c.h.b16 %v661
    %v705 = vunpack.c.l.b16 %v662
    %v706 = vunpack.c.h.b16 %v662
    %v707 = vunpack.c.l.b16 %v663
    %v708 = vunpack.c.h.b16 %v663
    %v709 = vunpack.c.l.b16 %v664
    %v710 = vunpack.c.h.b16 %v664
    %v711 = vunpack.c.l.b16 %v665
    %v712 = vunpack.c.h.b16 %v665
    %v713 = vunpack.c.l.b16 %v666
    %v714 = vunpack.c.h.b16 %v666
    %v715 = vunpack.c.l.b16 %v667
    %v716 = vunpack.c.h.b16 %v667
    %v717 = vunpack.c.l.b16 %v668
    %v718 = vunpack.c.h.b16 %v668
    %v719 = vunpack.c.l.b16 %v669
    %v720 = vunpack.c.h.b16 %v669
    %v721 = vunpack.c.l.b16 %v670
    %v722 = vunpack.c.h.b16 %v670
    %v723 = vunpack.c.l.b16 %v671
    %v724 = vunpack.c.h.b16 %v671
    %v725 = vunpack.c.l.b16 %v672
    %v726 = vunpack.c.h.b16 %v672
    %v727 = vunpack.c.l.b16 %v673
    %v728 = vunpack.c.h.b16 %v673
    %v729 = vunpack.c.l.b16 %v674
    %v730 = vunpack.c.h.b16 %v674
    %v731 = vpack.c.b16 %v701, %v699
    %v732 = vpack.c.b16 %v702, %v700
    %v733 = vpack.c.b16 %v705, %v703
    %v734 = vpack.c.b16 %v706, %v704
    %v735 = vpack.c.b16 %v709, %v707
    %v736 = vpack.c.b16 %v710, %v708
    %v737 = vpack.c.b16 %v713, %v711
    %v738 = vpack.c.b16 %v714, %v712
    %v739 = vpack.c.b16 %v717, %v715
    %v740 = vpack.c.b16 %v718, %v716
    %v741 = vpack.c.b16 %v721, %v719
    %v742 = vpack.c.b16 %v722, %v720
    %v743 = vpack.c.b16 %v725, %v723
    %v744 = vpack.c.b16 %v726, %v724
    %v745 = vpack.c.b16 %v729, %v727
    %v746 = vpack.c.b16 %v730, %v728
    %763 = vmatprep.subr.bf16.mxu0 %v732
    %764 = vmatpush1.bf16.msra.mxu0 %v731
    %765 = vmatprep.subr.bf16.mxu0 %v734
    %766 = vmatpush1.bf16.msra.mxu0 %v733
    %767 = vmatprep.subr.bf16.mxu0 %v736
    %768 = vmatpush1.bf16.msra.mxu0 %v735
    %769 = vmatprep.subr.bf16.mxu0 %v738
    %770 = vmatpush1.bf16.msra.mxu0 %v737
    %771 = vmatprep.subr.bf16.mxu0 %v740
    %772 = vmatpush1.bf16.msra.mxu0 %v739
    %773 = vmatprep.subr.bf16.mxu0 %v742
    %774 = vmatpush1.bf16.msra.mxu0 %v741
    %775 = vmatprep.subr.bf16.mxu0 %v744
    %776 = vmatpush1.bf16.msra.mxu0 %v743
    %777 = vmatprep.subr.bf16.mxu0 %v746
    %778 = vmatpush1.bf16.msra.mxu0 %v745
    %779 = vmatprep.subr.bf16.mxu0 0
    %780 = vmatpush1.bf16.msra.mxu0 0
    %781 = vmatprep.subr.bf16.mxu0 0
    %782 = vmatpush1.bf16.msra.mxu0 0
    %783 = vmatprep.subr.bf16.mxu0 0
    %784 = vmatpush1.bf16.msra.mxu0 0
    %785 = vmatprep.subr.bf16.mxu0 0
    %786 = vmatpush1.bf16.msra.mxu0 0
    %787 = vmatprep.subr.bf16.mxu0 0
    %788 = vmatpush1.bf16.msra.mxu0 0
    %789 = vmatprep.subr.bf16.mxu0 0
    %790 = vmatpush1.bf16.msra.mxu0 0
    %791 = vmatprep.subr.bf16.mxu0 0
    %792 = vmatpush1.bf16.msra.mxu0 0
    %793 = vmatprep.subr.bf16.mxu0 0
    %794 = vmatpush1.bf16.msra.mxu0 0
    %795 = vmatprep.mubr.bf16.mxu0 0
    %796 = vmatmul.mubr.bf16.gmra.mrb[0].mxu0 %v681
    %v797 = vpop.f32.mrb[0].mxu0
    %v798 = vadd.f32 0.0, %v797
    %v799 = vpop.f32.mrb[0].mxu0
    %v800 = vadd.f32 0.0, %v799
    %v801 = vpop.f32.mrb[0].mxu0
    %v802 = vpop.f32.mrb[0].mxu0
    %803 = vdwg.mxu0
    %v804 = vadd.f32 %v651, %v798
    %v805 = vadd.f32 %v653, %v800
    %v806 = vld [vmem:[%s12] sm:$0x3]
    %v808 = vlaneseq
    %v809 = vshrl.u32 %v808, 7
    %v810 = vsub.s32 0, %v809
    %v811 = vrot.slane %v806, %v810
    %v812 = vlaneseq
    %v813 = vshrl.u32 %v812, 7
    %v814 = vsub.s32 1, %v813
    %v815 = vrot.slane %v806, %v814
    %v818 = vadd.f32 %v804, %v811
    %v819 = vadd.f32 %v805, %v815
    %v820 = vtanh.pop %v818
    %v821 = vtanh.pop %v819
    %v822 = vmul.f32 %v820, %v820
    %v823 = vmul.f32 %v821, %v821
    %vm824 = vcmask 1041408
    %v825 = vsel %vm824, %v822, 0.0
    %v826 = vsel %vm824, %v823, 0.0
    %v827 = vadd.f32 %v825, %v826
    %828 = vadd.xlane.f32.xlu0 %v827
    %v829 = vpop.xlane.xlu0 %828
    %v830 = vmax.f32 %v829, 1e-24
    %v831 = vrsqrt.pop %v830
    %v832 = vmul.f32 %v820, %v831
    %v833 = vmul.f32 %v821, %v831
    %v836 = vcombine.low %v832, %v833
    %v838 = vunpack.c.l.s4 1983009808
    %v839 = vunpack.c.0.s8 %v838
    %v840 = vlaneseq
    %v841 = vshrl.u32 %v840, 7
    %v842 = vsub.s32 %v839, %v841
    %v843 = vrot.slane %v836, %v842
    %845 = vst [vmem:[#allocation20] sm:$0xf] %v843
    // Predicated region
    $region98: #{tpu_custom_call.1} parent=1 // pred_check
      _
    $region99: #{tpu_custom_call.1} parent=1 // pred_check_branch
      %847 = sbr.rel (0) target = $region101
    $region100: #{tpu_custom_call.1} parent=1 // pred_region
      %s849 = ssub.s32 64, 64
      %850 = vsyncadd [#allocation4], %s849
      %s852 = sshll.u32 [#allocation20], 4
      %s853 = int_to_ptr.vmem [resolvable:$true] %s852
      %855 = dma.vmem_to_hbm [thread:$0]  %s853, 64, %s13, [#allocation4]
    $region101: #{tpu_custom_call.1} parent=1 // pred_fallthru
      _
    // Predicated region
    $region102: #{tpu_custom_call.1} parent=1 // pred_check
      _
    $region103: #{tpu_custom_call.1} parent=1 // pred_check_branch
      %857 = sbr.rel (0) target = $region105
    $region104: #{tpu_custom_call.1} parent=1 // pred_region
      %858 = dma.done [#allocation4], 64
    $region105: #{tpu_custom_call.1} parent=1 // pred_fallthru
      _
    %859 = vsyncpa [#allocation3], 1
    %860 = vsyncpa [#allocation6], 1
    %861 = vsyncpa [#allocation9], 1
    %862 = vsyncpa [#allocation12], 1
    %863 = vsyncpa [#allocation15], 1
    %864 = vsyncpa [#allocation18], 1
    %865 = vsyncpa [#allocation4], 1

</llo_original>
